<compile_context>
chip_gen: v7x
topology: tpu7x:2x2x1
jax: 0.10.0
libtpu: 0.0.40
codegen_flags: <defaults>
</compile_context>

<pallas_src>
import functools

import jax
import jax.numpy as jnp
from jax.experimental import pallas as pl
from jax.experimental.pallas import tpu as pltpu

N_BIT_INPUT = 8
N_BIT_WEIGHT = 8
MIN_SCALE = 1e-8


def _round_up(v, m):
    return (v + m - 1) // m * m


def _fake_quant_div(v, zp, scale, qmax):
    """PyTorch UniformQuantize.forward (signed=False, dequantize=True), divide form."""
    return jnp.round(jnp.clip((v - zp) / scale, 0.0, qmax)) * scale + zp


# --------------------------------------------------------------------------- #
# Pass 2: tiled matmul kernel with on-the-fly input fake-quant.
# Grid order: (j over N tiles, i over M tiles, k over K tiles) — k innermost.
# --------------------------------------------------------------------------- #
def _qlinear_kernel(qp_ref, x_ref, wq_ref, bq_ref, o_ref, acc_ref, *, qmax_in):
    k = pl.program_id(2)

    @pl.when(k == 0)
    def _init():
        acc_ref[...] = jnp.zeros_like(acc_ref)

    # Scalar input qparams from SMEM: [zero_point, 1/scale (exact), scale].
    x_min = qp_ref[0]
    inv_s_x = qp_ref[1]
    s_x = qp_ref[2]

    x = x_ref[...]                                            # (tm, tk) f32
    # Fake-quant the x tile on the fly; reciprocal multiply instead of divide.
    xq = jnp.round(jnp.clip((x - x_min) * inv_s_x, 0.0, qmax_in)) * s_x + x_min

    # Weight arrives pre-quantized and pre-transposed as (tk, tn): pure MXU work.
    acc_ref[...] += jnp.dot(xq, wq_ref[...], preferred_element_type=jnp.float32)

    @pl.when(k == pl.num_programs(2) - 1)
    def _finalize():
        o_ref[...] = acc_ref[...] + bq_ref[...]


def quantized_linear(x, weight, bias,
                     n_bit_input=N_BIT_INPUT, n_bit_weight=N_BIT_WEIGHT,
                     block_m=None, block_n=None, block_k=None):
    """Forward of QuantizedLayer(nn.Linear(K, N)) on x of shape (B, T, K)."""
    B, T, K = x.shape
    N = weight.shape[0]
    M = B * T

    qmax_in = 2.0 ** n_bit_input - 1.0
    qmax_w = 2.0 ** n_bit_weight - 1.0

    x2d = x.reshape(M, K).astype(jnp.float32)
    w = weight.astype(jnp.float32)
    b = bias.astype(jnp.float32)

    # ---------------- Pass 1: qparams + hoisted weight/bias fake-quant ---------------- #
    # Input: calculate_qparams(flatten_dims=(1,-1), reduce_dim=0, reduce='extreme')
    #        -> per-tensor global min / max.
    x_min = jnp.min(x2d)
    x_max = jnp.max(x2d)
    s_x = jnp.maximum((x_max - x_min) / qmax_in, MIN_SCALE)
    inv_s_x = 1.0 / s_x                       # exact f32 reciprocal (NOT approx)
    qparams = jnp.stack([x_min, inv_s_x, s_x]).astype(jnp.float32)   # (3,) -> SMEM

    # Weight: per-output-row min/max (reduce_dim=None). Quantized ONCE here, not per tile.
    w_min = jnp.min(w, axis=1, keepdims=True)                 # (N, 1)
    w_max = jnp.max(w, axis=1, keepdims=True)                 # (N, 1)
    s_w = jnp.maximum((w_max - w_min) / qmax_w, MIN_SCALE)
    wq = _fake_quant_div(w, w_min, s_w, qmax_w)               # (N, K)
    wq_t = wq.T                                               # (K, N): MXU-friendly

    # Bias: per-tensor (flatten_dims=(0,-1), reduce_dim=0).
    b_min = jnp.min(b)
    b_max = jnp.max(b)
    s_b = jnp.maximum((b_max - b_min) / qmax_w, MIN_SCALE)
    bq = _fake_quant_div(b, b_min, s_b, qmax_w)               # (N,)

    # ---------------- Tiling / padding ---------------- #
    # Moderate defaults fit comfortably in scoped VMEM on v5e (16 MiB) through v7x
    # (32 MiB default / 64 MiB physical) with double-buffering; raise block_n/block_k
    # toward 1024 on v6e (128 MiB VMEM) if desired.
    tm = block_m if block_m is not None else min(256, _round_up(M, 8))
    tn = block_n if block_n is not None else min(512, _round_up(N, 128))
    tk = block_k if block_k is not None else min(512, _round_up(K, 128))

    M_pad = _round_up(M, tm)
    N_pad = _round_up(N, tn)
    K_pad = _round_up(K, tk)

    x_p = jnp.pad(x2d, ((0, M_pad - M), (0, K_pad - K)))          # zeros * wq=0 -> 0
    wq_p = jnp.pad(wq_t, ((0, K_pad - K), (0, N_pad - N)))        # zero-padded codes
    bq_p = jnp.pad(bq.reshape(1, N), ((0, 0), (0, N_pad - N)))

    grid = (N_pad // tn, M_pad // tm, K_pad // tk)

    kernel = functools.partial(_qlinear_kernel, qmax_in=qmax_in)

    out = pl.pallas_call(
        kernel,
        out_shape=jax.ShapeDtypeStruct((M_pad, N_pad), jnp.float32),
        grid=grid,
        in_specs=[
            pl.BlockSpec(memory_space=pltpu.MemorySpace.SMEM),            # qparams (3,)
            pl.BlockSpec((tm, tk), lambda j, i, k: (i, k)),               # x tile
            pl.BlockSpec((tk, tn), lambda j, i, k: (k, j)),               # wq tile (resident over i when 1 k-tile)
            pl.BlockSpec((1, tn), lambda j, i, k: (0, j)),                # bias tile
        ],
        out_specs=pl.BlockSpec((tm, tn), lambda j, i, k: (i, j)),         # lane-dense (tn % 128 == 0)
        scratch_shapes=[pltpu.VMEM((tm, tn), jnp.float32)],               # f32 accumulator
        compiler_params=pltpu.CompilerParams(
            dimension_semantics=("parallel", "parallel", "arbitrary")),
    )(qparams, x_p, wq_p, bq_p)

    return out[:M, :N].reshape(B, T, N)


# --------------------------------------------------------------------------- #
# Pure-JAX reference mirroring the PyTorch forward.  (The input-quant divide is
# written as a multiply by the exact reciprocal, matching the kernel bit-for-bit;
# this differs from torch only at the ulp level.)
# --------------------------------------------------------------------------- #
def quantized_linear_ref(x, weight, bias, n_bit_input=N_BIT_INPUT, n_bit_weight=N_BIT_WEIGHT):
    qmax_in = 2.0 ** n_bit_input - 1.0
    qmax_w = 2.0 ** n_bit_weight - 1.0

    x_min = jnp.min(x)
    x_max = jnp.max(x)
    s_x = jnp.maximum((x_max - x_min) / qmax_in, MIN_SCALE)
    inv_s_x = 1.0 / s_x
    xq = jnp.round(jnp.clip((x - x_min) * inv_s_x, 0.0, qmax_in)) * s_x + x_min

    w_min = jnp.min(weight, axis=1, keepdims=True)
    w_max = jnp.max(weight, axis=1, keepdims=True)
    s_w = jnp.maximum((w_max - w_min) / qmax_w, MIN_SCALE)
    wq = _fake_quant_div(weight, w_min, s_w, qmax_w)

    b_min = jnp.min(bias)
    b_max = jnp.max(bias)
    s_b = jnp.maximum((b_max - b_min) / qmax_w, MIN_SCALE)
    bq = _fake_quant_div(bias, b_min, s_b, qmax_w)

    return jnp.einsum("btk,nk->btn", xq, wq) + bq


if __name__ == "__main__":
    key = jax.random.PRNGKey(0)

    # --- small shapes consistent with the module: batch=2, seq=8, hidden 32->32 ---
    B, T, K, N = 2, 8, 32, 32
    kx, kw, kb = jax.random.split(key, 3)
    x = jax.random.normal(kx, (B, T, K), dtype=jnp.float32)
    bound = 1.0 / (K ** 0.5)        # nn.Linear-style init U(-1/sqrt(K), 1/sqrt(K))
    weight = jax.random.uniform(kw, (N, K), minval=-bound, maxval=bound, dtype=jnp.float32)
    bias = jax.random.uniform(kb, (N,), minval=-bound, maxval=bound, dtype=jnp.float32)

    y = jax.block_until_ready(quantized_linear(x, weight, bias))
    y_ref = quantized_linear_ref(x, weight, bias)
    assert y.shape == (B, T, N)
    assert jnp.allclose(y, y_ref, atol=1e-5, rtol=1e-5), "mismatch vs pure-JAX reference (small)"

    # --- second check: exercises padding + multi-tile K accumulation in the grid ---
    B2, T2, K2, N2 = 2, 72, 640, 200
    kx2, kw2, kb2 = jax.random.split(jax.random.PRNGKey(1), 3)
    x2 = jax.random.normal(kx2, (B2, T2, K2), dtype=jnp.float32)
    bound2 = 1.0 / (K2 ** 0.5)
    weight2 = jax.random.uniform(kw2, (N2, K2), minval=-bound2, maxval=bound2, dtype=jnp.float32)
    bias2 = jax.random.uniform(kb2, (N2,), minval=-bound2, maxval=bound2, dtype=jnp.float32)

    y2 = jax.block_until_ready(quantized_linear(x2, weight2, bias2))
    y2_ref = quantized_linear_ref(x2, weight2, bias2)
    assert y2.shape == (B2, T2, N2)
    assert jnp.allclose(y2, y2_ref, atol=1e-3, rtol=1e-3), "mismatch vs pure-JAX reference (tiled)"

    # NOTE: the PyTorch module also updates QuantMeasure running buffers (EMA of
    # zero_point/range) as a training-time side effect; that state update does not
    # affect the forward output and is omitted here.
    # TODO(synk): stochastic rounding path (stochastic=True) not exercised; would use
    # pltpu.prng_random_bits if needed.
    print("KERNEL_OK")
</pallas_src>

<mosaic_0001>
module attributes {stable_mosaic.version = 11 : i64} {
  func.func @_qlinear_kernel(%arg0: i32, %arg1: i32, %arg2: i32, %arg3: memref<3xf32, #tpu.memory_space<smem>>, %arg4: memref<16x128xf32, #tpu.memory_space<vmem>>, %arg5: memref<128x128xf32, #tpu.memory_space<vmem>>, %arg6: memref<1x128xf32, #tpu.memory_space<vmem>>, %arg7: memref<16x128xf32, #tpu.memory_space<vmem>>, %arg8: memref<16x128xf32, #tpu.memory_space<vmem>>) attributes {dimension_semantics = [#tpu.dimension_semantics<parallel>, #tpu.dimension_semantics<parallel>, #tpu.dimension_semantics<arbitrary>], iteration_bounds = array<i64: 1, 1, 1>, scalar_prefetch = 0 : i64, scratch_operands = 1 : i64, tpu.core_type = #tpu.core_type<tc>, window_params = [{transform_indices = @transform_0, window_bounds = array<i64: 3>}, {transform_indices = @transform_1, window_bounds = array<i64: 16, 128>}, {transform_indices = @transform_2, window_bounds = array<i64: 128, 128>}, {transform_indices = @transform_3, window_bounds = array<i64: 1, 128>}, {transform_indices = @transform_4, window_bounds = array<i64: 16, 128>}]} {
    %c0_i32 = arith.constant 0 : i32
    %0 = arith.cmpi eq, %arg2, %c0_i32 : i32
    %1 = arith.extui %0 : i1 to i32
    %c0_i32_0 = arith.constant 0 : i32
    %2 = arith.cmpi ne, %1, %c0_i32_0 : i32
    scf.if %2 {
      %cst_13 = arith.constant 0.000000e+00 : f32
      %28 = vector.broadcast %cst_13 : f32 to vector<16x128xf32>
      %c0_14 = arith.constant 0 : index
      %c0_15 = arith.constant 0 : index
      %29 = vector.load %arg8[%c0_14, %c0_15] : memref<16x128xf32, #tpu.memory_space<vmem>>, vector<16x128xf32>
      tpu.vector_store %arg8[%c0_14, %c0_15], %28 {strides = array<i32>} : memref<16x128xf32, #tpu.memory_space<vmem>>, vector<16x128xf32>,
    } else {
    }
    %c0 = arith.constant 0 : index
    %3 = memref.load %arg3[%c0] : memref<3xf32, #tpu.memory_space<smem>>
    %c1 = arith.constant 1 : index
    %4 = memref.load %arg3[%c1] : memref<3xf32, #tpu.memory_space<smem>>
    %c2 = arith.constant 2 : index
    %5 = memref.load %arg3[%c2] : memref<3xf32, #tpu.memory_space<smem>>
    %c0_1 = arith.constant 0 : index
    %c0_2 = arith.constant 0 : index
    %6 = vector.load %arg4[%c0_1, %c0_2] : memref<16x128xf32, #tpu.memory_space<vmem>>, vector<16x128xf32>
    %7 = vector.broadcast %3 : f32 to vector<16x128xf32>
    %8 = arith.subf %6, %7 : vector<16x128xf32>
    %9 = vector.broadcast %4 : f32 to vector<16x128xf32>
    %10 = arith.mulf %8, %9 : vector<16x128xf32>
    %cst = arith.constant 0.000000e+00 : f32
    %cst_3 = arith.constant 2.550000e+02 : f32
    %11 = vector.broadcast %cst : f32 to vector<16x128xf32>
    %12 = arith.maximumf %11, %10 : vector<16x128xf32>
    %13 = vector.broadcast %cst_3 : f32 to vector<16x128xf32>
    %14 = arith.minimumf %13, %12 : vector<16x128xf32>
    %15 = math.roundeven %14 : vector<16x128xf32>
    %16 = vector.broadcast %5 : f32 to vector<16x128xf32>
    %17 = arith.mulf %15, %16 : vector<16x128xf32>
    %18 = vector.broadcast %3 : f32 to vector<16x128xf32>
    %19 = arith.addf %17, %18 : vector<16x128xf32>
    %c0_4 = arith.constant 0 : index
    %c0_5 = arith.constant 0 : index
    %20 = vector.load %arg8[%c0_4, %c0_5] : memref<16x128xf32, #tpu.memory_space<vmem>>, vector<16x128xf32>
    %c0_6 = arith.constant 0 : index
    %c0_7 = arith.constant 0 : index
    %21 = vector.load %arg5[%c0_6, %c0_7] : memref<128x128xf32, #tpu.memory_space<vmem>>, vector<128x128xf32>
    %cst_8 = arith.constant dense<0.000000e+00> : vector<16x128xf32>
    %22 = tpu.matmul %19, %21, %cst_8 {dimension_numbers = #tpu.dot_dimension_numbers<[1], [0], [0], [1], [0, 0, 1, 1], [], []>} : vector<16x128xf32>, vector<128x128xf32>, vector<16x128xf32> -> vector<16x128xf32>
    %23 = arith.addf %20, %22 : vector<16x128xf32>
    %c0_9 = arith.constant 0 : index
    %c0_10 = arith.constant 0 : index
    %24 = vector.load %arg8[%c0_9, %c0_10] : memref<16x128xf32, #tpu.memory_space<vmem>>, vector<16x128xf32>
    tpu.vector_store %arg8[%c0_9, %c0_10], %23 {strides = array<i32>} : memref<16x128xf32, #tpu.memory_space<vmem>>, vector<16x128xf32>,
    %c0_i32_11 = arith.constant 0 : i32
    %25 = arith.cmpi eq, %arg2, %c0_i32_11 : i32
    %26 = arith.extui %25 : i1 to i32
    %c0_i32_12 = arith.constant 0 : i32
    %27 = arith.cmpi ne, %26, %c0_i32_12 : i32
    scf.if %27 {
      %c0_13 = arith.constant 0 : index
      %c0_14 = arith.constant 0 : index
      %28 = vector.load %arg8[%c0_13, %c0_14] : memref<16x128xf32, #tpu.memory_space<vmem>>, vector<16x128xf32>
      %c0_15 = arith.constant 0 : index
      %c0_16 = arith.constant 0 : index
      %29 = vector.load %arg6[%c0_15, %c0_16] : memref<1x128xf32, #tpu.memory_space<vmem>>, vector<1x128xf32>
      %30 = vector.broadcast %29 : vector<1x128xf32> to vector<16x128xf32>
      %31 = arith.addf %28, %30 : vector<16x128xf32>
      %c0_17 = arith.constant 0 : index
      %c0_18 = arith.constant 0 : index
      %32 = vector.load %arg7[%c0_17, %c0_18] : memref<16x128xf32, #tpu.memory_space<vmem>>, vector<16x128xf32>
      tpu.vector_store %arg7[%c0_17, %c0_18], %31 {strides = array<i32>} : memref<16x128xf32, #tpu.memory_space<vmem>>, vector<16x128xf32>,
    } else {
    }
    return
  }
  func.func @transform_0(%arg0: i32, %arg1: i32, %arg2: i32) -> i32 {
    %c0_i32 = arith.constant 0 : i32
    %c0_i32_0 = arith.constant 0 : i32
    return %c0_i32 : i32
  }
  func.func @transform_1(%arg0: i32, %arg1: i32, %arg2: i32) -> (i32, i32) {
    %c0_i32 = arith.constant 0 : i32
    return %arg1, %arg2 : i32, i32
  }
  func.func @transform_2(%arg0: i32, %arg1: i32, %arg2: i32) -> (i32, i32) {
    %c0_i32 = arith.constant 0 : i32
    return %arg2, %arg0 : i32, i32
  }
  func.func @transform_3(%arg0: i32, %arg1: i32, %arg2: i32) -> (i32, i32) {
    %c0_i32 = arith.constant 0 : i32
    %c0_i32_0 = arith.constant 0 : i32
    return %c0_i32, %arg0 : i32, i32
  }
  func.func @transform_4(%arg0: i32, %arg1: i32, %arg2: i32) -> (i32, i32) {
    %c0_i32 = arith.constant 0 : i32
    return %arg1, %arg0 : i32, i32
  }
}

</mosaic_0001>

<llo_original>
// kernel: tpu_custom_call.1
$region0: #{tpu_custom_call.1}
  #allocation0 [shape = 'u32[]', space=smem, size = 0x4, offset = 0x4, fixed_abs, tag = 'smem constant byte address 0x4 - core index']
  #allocation1 [shape = 'u32[144,128]{1,0:T(1,128)}', space=vmem, size = 0x12000, scoped, tag = 'internal scratch']
  #allocation2 [shape = 'f32[16,128]{1,0:T(8,128)}', space=vmem, size = 0x2000, scoped, tag = 'scratch operand']
  %s0 = inlined_call_operand.hbm [shape: f32[3], index: 0, kind: input, shape index: {}]
  %s1 = inlined_call_operand.hbm [shape: f32[16,128], index: 1, kind: input, shape index: {}]
  %s2 = inlined_call_operand.hbm [shape: f32[128,128], index: 2, kind: input, shape index: {}]
  %s3 = inlined_call_operand.vmem [shape: f32[1,128], index: 3, kind: input, shape index: {}]
  %s4 = inlined_call_operand.hbm [shape: f32[16,128], index: 4, kind: output, shape index: {}]
  %s5 = sld [smem:[#allocation0]]
  $region46: #{tpu_custom_call.1} parent=0
    _
  %s7 = ssub.s32 1, %s5
  %s8 = scalar_select 0, %s7, %s5
  $region1: #{tpu_custom_call.1} parent=0
    #allocation3 [shape = 'u8[512]{0}', space=smem, size = 0x200, scoped, tag = 'input window, operand 0, single buffered']
    #allocation4 [shape = 's32[1]{0}', space=sflag, size = 0x4, scoped, tag = 'scoped memory for tpu_custom_call.1']
    #allocation5 [shape = 's32[1]{0}', space=sflag, size = 0x4, scoped, tag = 'scoped memory for tpu_custom_call.1']
    #allocation6 [shape = 's32[1]{0}', space=sflag, size = 0x4, scoped, tag = 'scoped memory for tpu_custom_call.1']
    #allocation7 [shape = 'u8[8192]{0}', space=vmem, size = 0x2000, scoped, tag = 'input window, operand 1, single buffered']
    #allocation8 [shape = 'u8[65536]{0}', space=vmem, size = 0x10000, scoped, tag = 'input window, operand 2, single buffered']
    #allocation9 [shape = 's32[1]{0}', space=sflag, size = 0x4, scoped, tag = 'scoped memory for tpu_custom_call.1']
    #allocation10 [shape = 'u8[8192]{0}', space=vmem, size = 0x2000, scoped, tag = 'output window, operand 0, single buffered']
    %9 = vsyncpa [#allocation6], 0
    %10 = vsyncpa [#allocation4], 0
    %11 = vsyncpa [#allocation9], 0
    %12 = vsyncpa [#allocation5], 0
    // Predicated region
    $region2: #{tpu_custom_call.1} parent=1 // pred_check
      _
    $region3: #{tpu_custom_call.1} parent=1 // pred_check_branch
      %14 = sbr.rel (0) target = $region5
    $region4: #{tpu_custom_call.1} parent=1 // pred_region
      %s16 = ssub.s32 16, 16
      %17 = vsyncadd [#allocation6], %s16
      %20 = dma.hbm_to_smem %s0, 16, [#allocation3], [#allocation6]
    $region5: #{tpu_custom_call.1} parent=1 // pred_fallthru
      _
    // Predicated region
    $region6: #{tpu_custom_call.1} parent=1 // pred_check
      _
    $region7: #{tpu_custom_call.1} parent=1 // pred_check_branch
      %22 = sbr.rel (0) target = $region9
    $region8: #{tpu_custom_call.1} parent=1 // pred_region
      %s24 = ssub.s32 256, 256
      %25 = vsyncadd [#allocation4], %s24
      %s26 = sshll.u32 [#allocation7], 4
      %s27 = int_to_ptr.vmem [resolvable:$true] %s26
      %32 = dma.hbm_to_vmem [thread:$0]  %s1, 256, %s27, [#allocation4], 128, 128, 8
    $region9: #{tpu_custom_call.1} parent=1 // pred_fallthru
      _
    // Predicated region
    $region10: #{tpu_custom_call.1} parent=1 // pred_check
      _
    $region11: #{tpu_custom_call.1} parent=1 // pred_check_branch
      %34 = sbr.rel (0) target = $region13
    $region12: #{tpu_custom_call.1} parent=1 // pred_region
      %s36 = ssub.s32 2048, 2048
      %37 = vsyncadd [#allocation9], %s36
      %s38 = sshll.u32 [#allocation8], 4
      %s39 = int_to_ptr.vmem [resolvable:$true] %s38
      %44 = dma.hbm_to_vmem [thread:$0]  %s2, 2048, %s39, [#allocation9], 128, 128, 8
    $region13: #{tpu_custom_call.1} parent=1 // pred_fallthru
      _
    // Predicated region
    $region14: #{tpu_custom_call.1} parent=1 // pred_check
      _
    $region15: #{tpu_custom_call.1} parent=1 // pred_check_branch
      %46 = sbr.rel (0) target = $region17
    $region16: #{tpu_custom_call.1} parent=1 // pred_region
      _
    $region17: #{tpu_custom_call.1} parent=1 // pred_fallthru
      _
    // Predicated region
    $region18: #{tpu_custom_call.1} parent=1 // pred_check
      _
    $region19: #{tpu_custom_call.1} parent=1 // pred_check_branch
      %48 = sbr.rel (0) target = $region21
    $region20: #{tpu_custom_call.1} parent=1 // pred_region
      %49 = dma.done [#allocation6], 16
    $region21: #{tpu_custom_call.1} parent=1 // pred_fallthru
      _
    // Predicated region
    $region22: #{tpu_custom_call.1} parent=1 // pred_check
      _
    $region23: #{tpu_custom_call.1} parent=1 // pred_check_branch
      %51 = sbr.rel (0) target = $region25
    $region24: #{tpu_custom_call.1} parent=1 // pred_region
      %52 = dma.done [#allocation4], 256
    $region25: #{tpu_custom_call.1} parent=1 // pred_fallthru
      _
    // Predicated region
    $region26: #{tpu_custom_call.1} parent=1 // pred_check
      _
    $region27: #{tpu_custom_call.1} parent=1 // pred_check_branch
      %54 = sbr.rel (0) target = $region29
    $region28: #{tpu_custom_call.1} parent=1 // pred_region
      %55 = dma.done [#allocation9], 2048
    $region29: #{tpu_custom_call.1} parent=1 // pred_fallthru
      _
    %56 = sfence
    %p57 = scmp.eq.s32.totalorder 0, 0
    // Predicated region
    $region30: #{tpu_custom_call.1} parent=1 // pred_check
      %p58 = pneg %p57
    $region31: #{tpu_custom_call.1} parent=1 // pred_check_branch
      %60 = sbr.rel (%p58) target = $region33
    $region32: #{tpu_custom_call.1} parent=1 // pred_region
      %61 = vst [vmem:[#allocation2] sm:$0xff] 0.0
      %62 = vst [vmem:[#allocation2 + $0x8] sm:$0xff] 0.0
    $region33: #{tpu_custom_call.1} parent=1 // pred_fallthru
      _
    %s63 = sld [smem:[#allocation3]]
    %s64 = sld [smem:[#allocation3 + $0x1]]
    %s65 = sld [smem:[#allocation3 + $0x2]]
    %v66 = vld [vmem:[#allocation7] sm:$0xff]
    %v67 = vld [vmem:[#allocation7 + $0x8] sm:$0xff]
    %v68 = vstv %s63
    %v69 = vsub.f32 %v66, %v68
    %v70 = vsub.f32 %v67, %v68
    %v71 = vstv %s64
    %v72 = vmul.f32 %v69, %v71
    %v73 = vmul.f32 %v70, %v71
    %v74 = vmax.f32 %v72, 0.0
    %v75 = vmax.f32 %v73, 0.0
    %v76 = vmin.f32 %v74, 255.0
    %v77 = vmin.f32 %v75, 255.0
    %v78 = vround.ne.pseudo %v76
    %v79 = vround.ne.pseudo %v77
    %v80 = vstv %s65
    %v81 = vmul.f32 %v78, %v80
    %v82 = vmul.f32 %v79, %v80
    %v83 = vadd.f32 %v81, %v68
    %v84 = vadd.f32 %v82, %v68
    %v85 = vld [vmem:[#allocation2] sm:$0xff]
    %v86 = vld [vmem:[#allocation2 + $0x8] sm:$0xff]
    %v87 = vld [vmem:[#allocation8] sm:$0xff]
    %v88 = vld [vmem:[#allocation8 + $0x8] sm:$0xff]
    %v89 = vld [vmem:[#allocation8 + $0x10] sm:$0xff]
    %v90 = vld [vmem:[#allocation8 + $0x18] sm:$0xff]
    %v91 = vld [vmem:[#allocation8 + $0x20] sm:$0xff]
    %v92 = vld [vmem:[#allocation8 + $0x28] sm:$0xff]
    %v93 = vld [vmem:[#allocation8 + $0x30] sm:$0xff]
    %v94 = vld [vmem:[#allocation8 + $0x38] sm:$0xff]
    %v95 = vld [vmem:[#allocation8 + $0x40] sm:$0xff]
    %v96 = vld [vmem:[#allocation8 + $0x48] sm:$0xff]
    %v97 = vld [vmem:[#allocation8 + $0x50] sm:$0xff]
    %v98 = vld [vmem:[#allocation8 + $0x58] sm:$0xff]
    %v99 = vld [vmem:[#allocation8 + $0x60] sm:$0xff]
    %v100 = vld [vmem:[#allocation8 + $0x68] sm:$0xff]
    %v101 = vld [vmem:[#allocation8 + $0x70] sm:$0xff]
    %v102 = vld [vmem:[#allocation8 + $0x78] sm:$0xff]
    %103 = vmatprep.subr.mxu0 0.0
    %104 = vmatpush1.msra.mxu0 %v87
    %105 = vmatprep.subr.mxu0 0.0
    %106 = vmatpush1.msra.mxu0 %v88
    %107 = vmatprep.subr.mxu0 0.0
    %108 = vmatpush1.msra.mxu0 %v89
    %109 = vmatprep.subr.mxu0 0.0
    %110 = vmatpush1.msra.mxu0 %v90
    %111 = vmatprep.subr.mxu0 0.0
    %112 = vmatpush1.msra.mxu0 %v91
    %113 = vmatprep.subr.mxu0 0.0
    %114 = vmatpush1.msra.mxu0 %v92
    %115 = vmatprep.subr.mxu0 0.0
    %116 = vmatpush1.msra.mxu0 %v93
    %117 = vmatprep.subr.mxu0 0.0
    %118 = vmatpush1.msra.mxu0 %v94
    %119 = vmatprep.subr.mxu0 0.0
    %120 = vmatpush1.msra.mxu0 %v95
    %121 = vmatprep.subr.mxu0 0.0
    %122 = vmatpush1.msra.mxu0 %v96
    %123 = vmatprep.subr.mxu0 0.0
    %124 = vmatpush1.msra.mxu0 %v97
    %125 = vmatprep.subr.mxu0 0.0
    %126 = vmatpush1.msra.mxu0 %v98
    %127 = vmatprep.subr.mxu0 0.0
    %128 = vmatpush1.msra.mxu0 %v99
    %129 = vmatprep.subr.mxu0 0.0
    %130 = vmatpush1.msra.mxu0 %v100
    %131 = vmatprep.subr.mxu0 0.0
    %132 = vmatpush1.msra.mxu0 %v101
    %133 = vmatprep.subr.mxu0 0.0
    %134 = vmatpush1.msra.mxu0 %v102
    %135 = vmatprep.subr.mxu0 0.0
    %136 = vmatpush1.msra.mxu0 0.0
    %137 = vmatprep.subr.mxu0 0.0
    %138 = vmatpush1.msra.mxu0 0.0
    %139 = vmatprep.subr.mxu0 0.0
    %140 = vmatpush1.msra.mxu0 0.0
    %141 = vmatprep.subr.mxu0 0.0
    %142 = vmatpush1.msra.mxu0 0.0
    %143 = vmatprep.subr.mxu0 0.0
    %144 = vmatpush1.msra.mxu0 0.0
    %145 = vmatprep.subr.mxu0 0.0
    %146 = vmatpush1.msra.mxu0 0.0
    %147 = vmatprep.subr.mxu0 0.0
    %148 = vmatpush1.msra.mxu0 0.0
    %149 = vmatprep.subr.mxu0 0.0
    %150 = vmatpush1.msra.mxu0 0.0
    %151 = vmatprep.subr.mxu0 0.0
    %152 = vmatpush1.msra.mxu0 0.0
    %153 = vmatprep.subr.mxu0 0.0
    %154 = vmatpush1.msra.mxu0 0.0
    %155 = vmatprep.subr.mxu0 0.0
    %156 = vmatpush1.msra.mxu0 0.0
    %157 = vmatprep.subr.mxu0 0.0
    %158 = vmatpush1.msra.mxu0 0.0
    %159 = vmatprep.subr.mxu0 0.0
    %160 = vmatpush1.msra.mxu0 0.0
    %161 = vmatprep.subr.mxu0 0.0
    %162 = vmatpush1.msra.mxu0 0.0
    %163 = vmatprep.subr.mxu0 0.0
    %164 = vmatpush1.msra.mxu0 0.0
    %165 = vmatprep.subr.mxu0 0.0
    %166 = vmatpush1.msra.mxu0 0.0
    %167 = vmatprep.mubr.f32.mxu0 0.0
    %168 = vmatmul.mubr.f32.gmra.mrb[0].mxu0 %v83
    %v169 = vpop.f32.mrb[0].mxu0
    %v170 = vadd.f32 0.0, %v169
    %v171 = vpop.f32.mrb[0].mxu0
    %172 = vmatprep.mubr.f32.mxu0 0.0
    %173 = vmatmul.mubr.f32.gmra.mrb[0].mxu0 %v84
    %v174 = vpop.f32.mrb[0].mxu0
    %v175 = vadd.f32 0.0, %v174
    %v176 = vpop.f32.mrb[0].mxu0
    %177 = vdwg.mxu0
    %v178 = vadd.f32 %v85, %v170
    %v179 = vadd.f32 %v86, %v175
    %180 = vst [vmem:[#allocation2] sm:$0xff] %v178
    %181 = vst [vmem:[#allocation2 + $0x8] sm:$0xff] %v179
    // Predicated region
    $region34: #{tpu_custom_call.1} parent=1 // pred_check
      %p182 = pneg %p57
    $region35: #{tpu_custom_call.1} parent=1 // pred_check_branch
      %184 = sbr.rel (%p182) target = $region37
    $region36: #{tpu_custom_call.1} parent=1 // pred_region
      %v185 = vld [vmem:[#allocation2] sm:$0xff]
      %v186 = vld [vmem:[#allocation2 + $0x8] sm:$0xff]
      %v187 = vld [vmem:[%s3] sm:$0x1]
      %v189 = vlaneseq
      %v190 = vshrl.u32 %v189, 7
      %v191 = vsub.s32 0, %v190
      %v192 = vrot.slane %v187, %v191
      %v194 = vadd.f32 %v185, %v192
      %v195 = vadd.f32 %v186, %v192
      %196 = vst [vmem:[#allocation10] sm:$0xff] %v194
      %197 = vst [vmem:[#allocation10 + $0x8] sm:$0xff] %v195
    $region37: #{tpu_custom_call.1} parent=1 // pred_fallthru
      _
    // Predicated region
    $region38: #{tpu_custom_call.1} parent=1 // pred_check
      _
    $region39: #{tpu_custom_call.1} parent=1 // pred_check_branch
      %199 = sbr.rel (0) target = $region41
    $region40: #{tpu_custom_call.1} parent=1 // pred_region
      %s201 = ssub.s32 256, 256
      %202 = vsyncadd [#allocation5], %s201
      %s203 = sshll.u32 [#allocation10], 4
      %s204 = int_to_ptr.vmem [resolvable:$true] %s203
      %209 = dma.vmem_to_hbm [thread:$0]  %s204, 256, %s4, [#allocation5], 128, 128, 8
    $region41: #{tpu_custom_call.1} parent=1 // pred_fallthru
      _
    // Predicated region
    $region42: #{tpu_custom_call.1} parent=1 // pred_check
      _
    $region43: #{tpu_custom_call.1} parent=1 // pred_check_branch
      %211 = sbr.rel (0) target = $region45
    $region44: #{tpu_custom_call.1} parent=1 // pred_region
      %212 = dma.done [#allocation5], 256
    $region45: #{tpu_custom_call.1} parent=1 // pred_fallthru
      _
    %213 = vsyncpa [#allocation4], 1
    %214 = vsyncpa [#allocation9], 1
    %215 = vsyncpa [#allocation5], 1
    %216 = vsyncpa [#allocation6], 1

</llo_original>
